<compile_context>
chip_gen: v7x
topology: tpu7x:2x2x1
jax: 0.10.0
libtpu: 0.0.40
codegen_flags: <defaults>
</compile_context>

<pallas_src>
import functools

import jax
import jax.numpy as jnp
from jax.experimental import pallas as pl
from jax.experimental.pallas import tpu as pltpu


# ------------------------------ Pallas kernel ------------------------------

def _coordconv_kernel(x_ref, coords_ref, wb_ref, o_ref, *, num_ch):
    """Fused AddCoords + Conv2d(k=1, out_ch=1) + Sigmoid + gating multiply.

    x_ref:      (1, C, H*W)  VMEM  one batch element
    coords_ref: (2, H*W)     VMEM  rows = [xx, yy] coordinate channels
    wb_ref:     (C+3,)       SMEM  [w_0..w_{C-1}, w_xx, w_yy, bias]
    o_ref:      (1, C, H*W)  VMEM
    """
    x = x_ref[...]                                # (1, C, HW) f32
    xx = coords_ref[0:1, :]                       # (1, HW)
    yy = coords_ref[1:2, :]                       # (1, HW)

    # 1x1 conv over concat([x, xx, yy]) channels -> single-channel logit.
    logit = (xx * wb_ref[num_ch]
             + yy * wb_ref[num_ch + 1]
             + wb_ref[num_ch + 2])                # coord + bias terms
    for c in range(num_ch):                       # static C scalar*vector FMAs
        logit = logit + x[:, c, :] * wb_ref[c]    # (1, HW)

    gate = 1.0 / (1.0 + jnp.exp(-logit))          # sigmoid (EUP exp)
    o_ref[...] = x * gate[:, None, :]             # broadcast gate over C


# ------------------------------ wrapper ------------------------------------

def coordconv_block(x, weight, bias):
    """PyTorch CoordConv_block.forward.

    x:      (B, C, H, W) float32, NCHW
    weight: (1, C+2, 1, 1) Conv2d weight (channel order: x[0..C-1], xx, yy)
    bias:   (1,)
    returns (B, C, H, W) float32
    """
    B, C, H, W = x.shape
    HW = H * W

    # AddCoords constants (match PyTorch exactly):
    #   xx[b,0,i,j] = 2*i/(H-1) - 1 ;  yy[b,0,i,j] = 2*j/(W-1) - 1
    xi = 2.0 * jnp.arange(H, dtype=jnp.float32) / (H - 1) - 1.0
    yj = 2.0 * jnp.arange(W, dtype=jnp.float32) / (W - 1) - 1.0
    xx = jnp.broadcast_to(xi[:, None], (H, W)).reshape(HW)
    yy = jnp.broadcast_to(yj[None, :], (H, W)).reshape(HW)
    coords = jnp.stack([xx, yy], axis=0)                       # (2, HW)

    # [w_0..w_{C-1}, w_xx, w_yy, bias] as SMEM scalars.
    wb = jnp.concatenate(
        [weight.reshape(C + 2), bias.reshape(1)]).astype(jnp.float32)  # (C+3,)

    x_flat = x.reshape(B, C, HW).astype(jnp.float32)

    kernel = functools.partial(_coordconv_kernel, num_ch=C)
    out = pl.pallas_call(
        kernel,
        out_shape=jax.ShapeDtypeStruct((B, C, HW), jnp.float32),
        grid=(B,),
        in_specs=[
            pl.BlockSpec((1, C, HW), lambda b: (b, 0, 0)),      # x (per batch)
            pl.BlockSpec((2, HW), lambda b: (0, 0)),            # coords (shared)
            pl.BlockSpec(memory_space=pltpu.MemorySpace.SMEM),  # weights+bias
        ],
        out_specs=pl.BlockSpec((1, C, HW), lambda b: (b, 0, 0)),
        compiler_params=pltpu.CompilerParams(
            dimension_semantics=("parallel",)),
    )(x_flat, coords, wb)

    return out.reshape(B, C, H, W)


# --------------------------- pure-JAX reference -----------------------------

def coordconv_ref(x, weight, bias):
    B, C, H, W = x.shape
    xi = 2.0 * jnp.arange(H, dtype=jnp.float32) / (H - 1) - 1.0
    yj = 2.0 * jnp.arange(W, dtype=jnp.float32) / (W - 1) - 1.0
    xx = jnp.broadcast_to(xi[:, None], (H, W))[None, None]
    yy = jnp.broadcast_to(yj[None, :], (H, W))[None, None]
    xx = jnp.broadcast_to(xx, (B, 1, H, W))
    yy = jnp.broadcast_to(yy, (B, 1, H, W))
    ret = jnp.concatenate([x, xx, yy], axis=1)                  # (B, C+2, H, W)
    logit = jnp.einsum("bchw,c->bhw", ret, weight.reshape(C + 2)) + bias[0]
    gate = jax.nn.sigmoid(logit)[:, None, :, :]
    return x * gate


# ------------------------------- main ---------------------------------------

if __name__ == "__main__":
    key = jax.random.PRNGKey(0)
    kx, kw, kb = jax.random.split(key, 3)

    B, C, H, W = 2, 4, 16, 16
    x = jax.random.normal(kx, (B, C, H, W), jnp.float32)

    in_size = C + 2                       # AddCoords adds xx, yy channels
    bound = 1.0 / (in_size ** 0.5)        # PyTorch Conv2d default init range
    weight = jax.random.uniform(kw, (1, in_size, 1, 1), jnp.float32,
                                -bound, bound)
    bias = jax.random.uniform(kb, (1,), jnp.float32, -bound, bound)

    out = jax.jit(coordconv_block)(x, weight, bias)
    jax.block_until_ready(out)

    ref = coordconv_ref(x, weight, bias)
    assert out.shape == (B, C, H, W), out.shape
    max_err = float(jnp.max(jnp.abs(out - ref)))
    assert max_err < 1e-4, f"max abs error {max_err}"

    print("KERNEL_OK")
</pallas_src>

<mosaic_0001>
module attributes {stable_mosaic.version = 11 : i64} {
  func.func @_coordconv_kernel(%arg0: i32, %arg1: memref<1x4x256xf32, #tpu.memory_space<vmem>>, %arg2: memref<2x256xf32, #tpu.memory_space<vmem>>, %arg3: memref<7xf32, #tpu.memory_space<smem>>, %arg4: memref<1x4x256xf32, #tpu.memory_space<vmem>>) attributes {dimension_semantics = [#tpu.dimension_semantics<parallel>], iteration_bounds = array<i64: 2>, scalar_prefetch = 0 : i64, scratch_operands = 0 : i64, tpu.core_type = #tpu.core_type<tc>, window_params = [{transform_indices = @transform_0, window_bounds = array<i64: 1, 4, 256>}, {pipeline_mode = #tpu.pipeline_mode<synchronous>, transform_indices = @transform_1, window_bounds = array<i64: 2, 256>}, {transform_indices = @transform_2, window_bounds = array<i64: 7>}, {transform_indices = @transform_3, window_bounds = array<i64: 1, 4, 256>}]} {
    %c0 = arith.constant 0 : index
    %c0_0 = arith.constant 0 : index
    %c0_1 = arith.constant 0 : index
    %0 = vector.load %arg1[%c0, %c0_0, %c0_1] : memref<1x4x256xf32, #tpu.memory_space<vmem>>, vector<1x4x256xf32>
    %c0_2 = arith.constant 0 : index
    %c0_3 = arith.constant 0 : index
    %1 = vector.load %arg2[%c0_2, %c0_3] : memref<2x256xf32, #tpu.memory_space<vmem>>, vector<1x256xf32>
    %c1 = arith.constant 1 : index
    %c0_4 = arith.constant 0 : index
    %2 = vector.load %arg2[%c1, %c0_4] : memref<2x256xf32, #tpu.memory_space<vmem>>, vector<1x256xf32>
    %c4 = arith.constant 4 : index
    %3 = memref.load %arg3[%c4] : memref<7xf32, #tpu.memory_space<smem>>
    %4 = vector.broadcast %3 : f32 to vector<1x256xf32>
    %5 = arith.mulf %1, %4 : vector<1x256xf32>
    %c5 = arith.constant 5 : index
    %6 = memref.load %arg3[%c5] : memref<7xf32, #tpu.memory_space<smem>>
    %7 = vector.broadcast %6 : f32 to vector<1x256xf32>
    %8 = arith.mulf %2, %7 : vector<1x256xf32>
    %9 = arith.addf %5, %8 : vector<1x256xf32>
    %c6 = arith.constant 6 : index
    %10 = memref.load %arg3[%c6] : memref<7xf32, #tpu.memory_space<smem>>
    %11 = vector.broadcast %10 : f32 to vector<1x256xf32>
    %12 = arith.addf %9, %11 : vector<1x256xf32>
    %13 = vector.extract_strided_slice %0 {offsets = [0, 0, 0], sizes = [1, 1, 256], strides = [1, 1, 1]} : vector<1x4x256xf32> to vector<1x1x256xf32>
    %14 = vector.shape_cast %13 : vector<1x1x256xf32> to vector<1x256xf32>
    %c0_5 = arith.constant 0 : index
    %15 = memref.load %arg3[%c0_5] : memref<7xf32, #tpu.memory_space<smem>>
    %16 = vector.broadcast %15 : f32 to vector<1x256xf32>
    %17 = arith.mulf %14, %16 : vector<1x256xf32>
    %18 = arith.addf %12, %17 : vector<1x256xf32>
    %19 = vector.extract_strided_slice %0 {offsets = [0, 1, 0], sizes = [1, 1, 256], strides = [1, 1, 1]} : vector<1x4x256xf32> to vector<1x1x256xf32>
    %20 = vector.shape_cast %19 : vector<1x1x256xf32> to vector<1x256xf32>
    %c1_6 = arith.constant 1 : index
    %21 = memref.load %arg3[%c1_6] : memref<7xf32, #tpu.memory_space<smem>>
    %22 = vector.broadcast %21 : f32 to vector<1x256xf32>
    %23 = arith.mulf %20, %22 : vector<1x256xf32>
    %24 = arith.addf %18, %23 : vector<1x256xf32>
    %25 = vector.extract_strided_slice %0 {offsets = [0, 2, 0], sizes = [1, 1, 256], strides = [1, 1, 1]} : vector<1x4x256xf32> to vector<1x1x256xf32>
    %26 = vector.shape_cast %25 : vector<1x1x256xf32> to vector<1x256xf32>
    %c2 = arith.constant 2 : index
    %27 = memref.load %arg3[%c2] : memref<7xf32, #tpu.memory_space<smem>>
    %28 = vector.broadcast %27 : f32 to vector<1x256xf32>
    %29 = arith.mulf %26, %28 : vector<1x256xf32>
    %30 = arith.addf %24, %29 : vector<1x256xf32>
    %31 = vector.extract_strided_slice %0 {offsets = [0, 3, 0], sizes = [1, 1, 256], strides = [1, 1, 1]} : vector<1x4x256xf32> to vector<1x1x256xf32>
    %32 = vector.shape_cast %31 : vector<1x1x256xf32> to vector<1x256xf32>
    %c3 = arith.constant 3 : index
    %33 = memref.load %arg3[%c3] : memref<7xf32, #tpu.memory_space<smem>>
    %34 = vector.broadcast %33 : f32 to vector<1x256xf32>
    %35 = arith.mulf %32, %34 : vector<1x256xf32>
    %36 = arith.addf %30, %35 : vector<1x256xf32>
    %cst = arith.constant 0.000000e+00 : f32
    %37 = vector.broadcast %cst : f32 to vector<1x256xf32>
    %38 = arith.subf %37, %36 : vector<1x256xf32>
    %39 = math.exp %38 : vector<1x256xf32>
    %cst_7 = arith.constant 1.000000e+00 : f32
    %40 = vector.broadcast %cst_7 : f32 to vector<1x256xf32>
    %41 = arith.addf %40, %39 : vector<1x256xf32>
    %cst_8 = arith.constant 1.000000e+00 : f32
    %42 = vector.broadcast %cst_8 : f32 to vector<1x256xf32>
    %43 = arith.divf %42, %41 : vector<1x256xf32>
    %44 = vector.shape_cast %43 : vector<1x256xf32> to vector<1x1x256xf32>
    %45 = vector.broadcast %44 : vector<1x1x256xf32> to vector<1x4x256xf32>
    %46 = arith.mulf %0, %45 : vector<1x4x256xf32>
    %c0_9 = arith.constant 0 : index
    %c0_10 = arith.constant 0 : index
    %c0_11 = arith.constant 0 : index
    %47 = vector.load %arg4[%c0_9, %c0_10, %c0_11] : memref<1x4x256xf32, #tpu.memory_space<vmem>>, vector<1x4x256xf32>
    tpu.vector_store %arg4[%c0_9, %c0_10, %c0_11], %46 {strides = array<i32>} : memref<1x4x256xf32, #tpu.memory_space<vmem>>, vector<1x4x256xf32>,
    return
  }
  func.func @transform_0(%arg0: i32) -> (i32, i32, i32) {
    %c0_i32 = arith.constant 0 : i32
    %c0_i32_0 = arith.constant 0 : i32
    %c0_i32_1 = arith.constant 0 : i32
    return %arg0, %c0_i32, %c0_i32_0 : i32, i32, i32
  }
  func.func @transform_1(%arg0: i32) -> (i32, i32) {
    %c0_i32 = arith.constant 0 : i32
    %c0_i32_0 = arith.constant 0 : i32
    %c0_i32_1 = arith.constant 0 : i32
    return %c0_i32, %c0_i32_0 : i32, i32
  }
  func.func @transform_2(%arg0: i32) -> i32 {
    %c0_i32 = arith.constant 0 : i32
    %c0_i32_0 = arith.constant 0 : i32
    return %c0_i32 : i32
  }
  func.func @transform_3(%arg0: i32) -> (i32, i32, i32) {
    %c0_i32 = arith.constant 0 : i32
    %c0_i32_0 = arith.constant 0 : i32
    %c0_i32_1 = arith.constant 0 : i32
    return %arg0, %c0_i32, %c0_i32_0 : i32, i32, i32
  }
}

</mosaic_0001>

<llo_original>
// kernel: coordconv_block.1
$region0: #{coordconv_block.1}
  #allocation0 [shape = 'u32[]', space=smem, size = 0x4, offset = 0x4, fixed_abs, tag = 'smem constant byte address 0x4 - core index']
  #allocation1 [shape = 'u32[144,128]{1,0:T(1,128)}', space=vmem, size = 0x12000, scoped, tag = 'internal scratch']
  %s0 = inlined_call_operand.vmem [shape: f32[2,4,256], index: 0, kind: input, shape index: {}]
  %s1 = inlined_call_operand.vmem [shape: f32[2,256], index: 1, kind: input, shape index: {}]
  %s2 = inlined_call_operand.vmem [shape: f32[7], index: 2, kind: input, shape index: {}]
  %s3 = inlined_call_operand.vmem [shape: f32[2,4,256], index: 3, kind: output, shape index: {}]
  %s4 = sld [smem:[#allocation0]]
  $region49: #{coordconv_block.1} parent=0
    _
  %s6 = ssub.s32 1, %s4
  %s7 = scalar_select 0, %s6, %s4
  $region1: #{coordconv_block.1} parent=0
    #allocation2 [shape = 'u8[512]{0}', space=smem, size = 0x200, scoped, tag = 'input window, operand 2, single buffered']
    #allocation3 [shape = 's32[2]{0}', space=sflag, size = 0x8, scoped, tag = 'scoped memory for coordconv_block.1']
    %8 = vsyncpa [#allocation3], 0
    loop: start=0, step=1, limit=4
    $region2: #{coordconv_block.1} parent=1 // loop_pre_header
      _
    $region3: #{coordconv_block.1} parent=1 // loop_header
      %s10 = sphi 0, %s14
      %p11 = scmp.ge.s32.totalorder %s10, 4
      %s20 = sphi 0, %s22
      %s23 = sphi 0, %s20
      %s24 = sphi 0, %s23
      %s40 = sphi 0, %s24
      %s44 = sphi 0, %s44
      %s46 = sphi 0, %s44
      %s47 = sphi 0, %s46
      %s61 = sphi 0, %s47
      %s65 = sphi 0, %s65
      %s67 = sphi 0, %s65
      %s68 = sphi 0, %s67
      %s82 = sphi 0, %s68
      %s88 = sphi 0, %s90
      %s91 = sphi 0, %s88
      %s92 = sphi 0, %s91
      %s108 = sphi 0, %s92
    $region4: #{coordconv_block.1} parent=1 // loop_header_branch
      %13 = sbr.rel (%p11) target = $region8
    $region5: #{coordconv_block.1} parent=1 // loop_body
      %s15 = ssub.s32 %s10, 1
      %s16 = ssub.s32 %s10, 2
      %s17 = sadd.s32 %s10, 1
      %s18 = ssub.s32 %s10, %s17
      %p19 = scmp.eq.s32.totalorder %s18, 0
      %s21 = sadd.s32 %s20, 1
      %s22 = scalar_select %p19, %s20, %s21
      %p25 = pneg %p19
      %p26 = scmp.eq.s32.totalorder %s10, 1
      %p27 = por %p25, %p26
      %p28 = scmp.ne.s32.totalorder %s20, %s23
      %p29 = scmp.eq.s32.totalorder %s10, 0
      %p30 = por %p28, %p29
      %p31 = scmp.ne.s32.totalorder %s20, %s23
      %p32 = scmp.eq.s32.totalorder %s15, 1
      %p33 = por %p31, %p32
      %p34 = scmp.ne.s32.totalorder %s23, %s24
      %p35 = scmp.eq.s32.totalorder %s15, 0
      %p36 = por %p34, %p35
      %p37 = scmp.ne.s32.totalorder %s23, %s24
      %p38 = scmp.eq.s32.totalorder %s16, 1
      %p39 = por %p37, %p38
      %p41 = scmp.ne.s32.totalorder %s24, %s40
      %p42 = scmp.eq.s32.totalorder %s16, 0
      %p43 = por %p41, %p42
      %s45 = sadd.s32 %s44, 1
      %p48 = scmp.eq.s32.totalorder %s10, 1
      %p49 = scmp.ne.s32.totalorder %s44, %s46
      %p50 = scmp.eq.s32.totalorder %s10, 0
      %p51 = por %p49, %p50
      %p52 = scmp.ne.s32.totalorder %s44, %s46
      %p53 = scmp.eq.s32.totalorder %s15, 1
      %p54 = por %p52, %p53
      %p55 = scmp.ne.s32.totalorder %s46, %s47
      %p56 = scmp.eq.s32.totalorder %s15, 0
      %p57 = por %p55, %p56
      %p58 = scmp.ne.s32.totalorder %s46, %s47
      %p59 = scmp.eq.s32.totalorder %s16, 1
      %p60 = por %p58, %p59
      %p62 = scmp.ne.s32.totalorder %s47, %s61
      %p63 = scmp.eq.s32.totalorder %s16, 0
      %p64 = por %p62, %p63
      %s66 = sadd.s32 %s65, 1
      %p69 = scmp.eq.s32.totalorder %s10, 1
      %p70 = scmp.ne.s32.totalorder %s65, %s67
      %p71 = scmp.eq.s32.totalorder %s10, 0
      %p72 = por %p70, %p71
      %p73 = scmp.ne.s32.totalorder %s65, %s67
      %p74 = scmp.eq.s32.totalorder %s15, 1
      %p75 = por %p73, %p74
      %p76 = scmp.ne.s32.totalorder %s67, %s68
      %p77 = scmp.eq.s32.totalorder %s15, 0
      %p78 = por %p76, %p77
      %p79 = scmp.ne.s32.totalorder %s67, %s68
      %p80 = scmp.eq.s32.totalorder %s16, 1
      %p81 = por %p79, %p80
      %p83 = scmp.ne.s32.totalorder %s68, %s82
      %p84 = scmp.eq.s32.totalorder %s16, 0
      %p85 = por %p83, %p84
      %s86 = ssub.s32 %s10, %s17
      %p87 = scmp.eq.s32.totalorder %s86, 0
      %s89 = sadd.s32 %s88, 1
      %s90 = scalar_select %p87, %s88, %s89
      %p93 = pneg %p87
      %p94 = scmp.eq.s32.totalorder %s10, 1
      %p95 = por %p93, %p94
      %p96 = scmp.ne.s32.totalorder %s88, %s91
      %p97 = scmp.eq.s32.totalorder %s10, 0
      %p98 = por %p96, %p97
      %p99 = scmp.ne.s32.totalorder %s88, %s91
      %p100 = scmp.eq.s32.totalorder %s15, 1
      %p101 = por %p99, %p100
      %p102 = scmp.ne.s32.totalorder %s91, %s92
      %p103 = scmp.eq.s32.totalorder %s15, 0
      %p104 = por %p102, %p103
      %p105 = scmp.ne.s32.totalorder %s91, %s92
      %p106 = scmp.eq.s32.totalorder %s16, 1
      %p107 = por %p105, %p106
      %p109 = scmp.ne.s32.totalorder %s92, %s108
      %p110 = scmp.eq.s32.totalorder %s16, 0
      %p111 = por %p109, %p110
      %p112 = scmp.le.s32.totalorder 1, %s10
      %p113 = scmp.lt.s32.totalorder %s10, 3
      %p114 = pnand %p112, %p113
      %p115 = pneg %p114
      // Predicated region
      $region9: #{coordconv_block.1} parent=5 // pred_check
        _
      $region10: #{coordconv_block.1} parent=5 // pred_check_branch
        %117 = sbr.rel (%p114) target = $region12
      $region11: #{coordconv_block.1} parent=5 // pred_region
        %s118 = ssub.s32 %s10, 1
        // Predicated region
        $region13: #{coordconv_block.1} parent=11 // pred_check
          %p119 = pneg %p57
        $region14: #{coordconv_block.1} parent=11 // pred_check_branch
          %121 = sbr.rel (%p119) target = $region16
        $region15: #{coordconv_block.1} parent=11 // pred_region
          _
        $region16: #{coordconv_block.1} parent=11 // pred_fallthru
          _
        // Predicated region
        $region17: #{coordconv_block.1} parent=11 // pred_check
          %p122 = pneg %p78
        $region18: #{coordconv_block.1} parent=11 // pred_check_branch
          %124 = sbr.rel (%p122) target = $region20
        $region19: #{coordconv_block.1} parent=11 // pred_region
          %s126 = ssub.s32 16, 16
          %127 = vsyncadd [#allocation3], %s126
          %s129 = sshll.u32 %s2, 4
          %s130 = int_to_ptr.vmem [resolvable:$true] %s129
          %132 = dma.vmem_to_smem %s130, 16, [#allocation2], [#allocation3]
        $region20: #{coordconv_block.1} parent=11 // pred_fallthru
          _
      $region12: #{coordconv_block.1} parent=5 // pred_fallthru
        _
      %p133 = scmp.lt.s32.totalorder %s10, 2
      // Predicated region
      $region21: #{coordconv_block.1} parent=5 // pred_check
        %p134 = pneg %p133
      $region22: #{coordconv_block.1} parent=5 // pred_check_branch
        %136 = sbr.rel (%p134) target = $region24
      $region23: #{coordconv_block.1} parent=5 // pred_region
        // Predicated region
        $region25: #{coordconv_block.1} parent=23 // pred_check
          %p137 = pneg %p30
        $region26: #{coordconv_block.1} parent=23 // pred_check_branch
          %139 = sbr.rel (%p137) target = $region28
        $region27: #{coordconv_block.1} parent=23 // pred_region
          %p140 = scmp.lt.s32.totalorder %s10, 1
          %s141 = scalar_select %p140, %s10, 1
          %s142 = smul.addr %s141, 2
          %s143 = smul.addr %s142, 4
          %s144 = scalar_lea.vmem %s0, %s143
        $region28: #{coordconv_block.1} parent=23 // pred_fallthru
          _
      $region24: #{coordconv_block.1} parent=5 // pred_fallthru
        _
      %p145 = scmp.le.s32.totalorder 1, %s10
      %p146 = scmp.lt.s32.totalorder %s10, 3
      %p147 = pnand %p145, %p146
      %p148 = pneg %p147
      // Predicated region
      $region29: #{coordconv_block.1} parent=5 // pred_check
        _
      $region30: #{coordconv_block.1} parent=5 // pred_check_branch
        %150 = sbr.rel (%p147) target = $region32
      $region31: #{coordconv_block.1} parent=5 // pred_region
        %s151 = ssub.s32 %s10, 1
        // Predicated region
        $region33: #{coordconv_block.1} parent=31 // pred_check
          %p152 = pneg %p78
        $region34: #{coordconv_block.1} parent=31 // pred_check_branch
          %154 = sbr.rel (%p152) target = $region36
        $region35: #{coordconv_block.1} parent=31 // pred_region
          %155 = dma.done [#allocation3], 16
        $region36: #{coordconv_block.1} parent=31 // pred_fallthru
          _
        %156 = sfence
        %p157 = scmp.lt.s32.totalorder %s15, 1
        %s158 = scalar_select %p157, %s15, 1
        %s159 = smul.addr %s158, 2
        %s160 = smul.addr %s159, 4
        %s161 = scalar_lea.vmem %s0, %s160
        %p162 = pneg %p36
        %p163 = pneg %p33
        %p164 = pneg %p57
        %p165 = pneg %p54
        %p166 = pneg %p78
        %p167 = pneg %p75
        %p168 = pneg %p104
        %p169 = pneg %p101
        %p170 = scmp.lt.s32.totalorder %s15, 1
        %s171 = scalar_select %p170, %s15, 1
        %s172 = smul.addr %s171, 2
        %s173 = smul.addr %s172, 4
        %s174 = scalar_lea.vmem %s3, %s173
        %p175 = scmp.lt.s32.totalorder %s15, 1
        %s176 = scalar_select %p175, %s15, 1
        %s177 = smul.addr %s176, 2
        %s178 = smul.addr %s177, 4
        %s179 = scalar_lea.vmem %s0, %s178
        %p180 = scmp.lt.s32.totalorder %s15, 1
        %s181 = scalar_select %p180, %s15, 1
        %s182 = smul.addr %s181, 2
        %s183 = smul.addr %s182, 4
        %s184 = scalar_lea.vmem %s3, %s183
        %v185 = vld [vmem:[%s179] sm:$0xff]
        %v186 = vld [vmem:[%s1] ss:$2 sm:$0x3]
        %s187 = scalar_lea.vmem %s1, 1
        %v188 = vld [vmem:[%s187] ss:$2 sm:$0x3]
        %s189 = sld [smem:[#allocation2 + $0x4]]
        %v190 = vstv %s189
        %v191 = vmul.f32 %v186, %v190
        %s192 = sld [smem:[#allocation2 + $0x5]]
        %v193 = vstv %s192
        %v194 = vmul.f32 %v188, %v193
        %v195 = vadd.f32 %v191, %v194
        %s196 = sld [smem:[#allocation2 + $0x6]]
        %v197 = vstv %s196
        %v198 = vadd.f32 %v195, %v197
        %s199 = sld [smem:[#allocation2]]
        %v200 = vstv %s199
        %v201 = vmul.f32 %v185, %v200
        %v204 = vunpack.c.l.s4 1966171168
        %v205 = vunpack.c.0.s8 %v204
        %v206 = vlaneseq
        %v207 = vshrl.u32 %v206, 7
        %v208 = vsub.s32 %v205, %v207
        %v209 = vrot.slane %v201, %v208
        %v211 = vunpack.c.l.s4 1966171168
        %v212 = vunpack.c.0.s8 %v211
        %v213 = vlaneseq
        %v214 = vshrl.u32 %v213, 7
        %v215 = vsub.s32 %v212, %v214
        %v216 = vrot.slane %v209, %v215
        %v218 = vadd.f32 %v198, %v216
        %s219 = sld [smem:[#allocation2 + $0x1]]
        %v220 = vstv %s219
        %v221 = vmul.f32 %v185, %v220
        %v224 = vunpack.c.l.s4 1966171168
        %v225 = vunpack.c.0.s8 %v224
        %v226 = vlaneseq
        %v227 = vshrl.u32 %v226, 7
        %v228 = vsub.s32 %v225, %v227
        %v229 = vrot.slane %v221, %v228
        %v230 = vcombine.high %v229, %v229
        %v232 = vunpack.c.l.s4 1966171168
        %v233 = vunpack.c.0.s8 %v232
        %v234 = vlaneseq
        %v235 = vshrl.u32 %v234, 7
        %v236 = vsub.s32 %v233, %v235
        %v237 = vrot.slane %v230, %v236
        %v239 = vadd.f32 %v218, %v237
        %s240 = sld [smem:[#allocation2 + $0x2]]
        %v241 = vstv %s240
        %v242 = vmul.f32 %v185, %v241
        %v245 = vunpack.c.l.s4 1966171168
        %v246 = vunpack.c.0.s8 %v245
        %v247 = vlaneseq
        %v248 = vshrl.u32 %v247, 7
        %v249 = vsub.s32 %v246, %v248
        %v250 = vrot.slane %v242, %v249
        %v252 = vunpack.c.l.s4 1966171168
        %v253 = vunpack.c.0.s8 %v252
        %v254 = vlaneseq
        %v255 = vshrl.u32 %v254, 7
        %v256 = vsub.s32 %v253, %v255
        %v257 = vrot.slane %v250, %v256
        %v258 = vcombine.high %v257, %v257
        %v260 = vadd.f32 %v239, %v258
        %s261 = sld [smem:[#allocation2 + $0x3]]
        %v262 = vstv %s261
        %v263 = vmul.f32 %v185, %v262
        %v266 = vunpack.c.l.s4 1966171168
        %v267 = vunpack.c.0.s8 %v266
        %v268 = vlaneseq
        %v269 = vshrl.u32 %v268, 7
        %v270 = vsub.s32 %v267, %v269
        %v271 = vrot.slane %v263, %v270
        %v272 = vcombine.high %v271, %v271
        %v274 = vunpack.c.l.s4 1966171168
        %v275 = vunpack.c.0.s8 %v274
        %v276 = vlaneseq
        %v277 = vshrl.u32 %v276, 7
        %v278 = vsub.s32 %v275, %v277
        %v279 = vrot.slane %v272, %v278
        %v280 = vcombine.high %v279, %v279
        %v282 = vadd.f32 %v260, %v280
        %v283 = vsub.f32 0.0, %v282
        %v284 = vmul.f32 %v283, 1.442695
        %v285 = vpow.pop %v284
        %v286 = vadd.f32 %v285, 1.0
        %v287 = vrcp.pop %v286
        %v288 = vmul.f32 1.0, %v287
        %v290 = vlaneseq
        %v291 = vshrl.u32 %v290, 7
        %v292 = vsub.s32 0, %v291
        %v293 = vrot.slane %v288, %v292
        %v294 = vlaneseq
        %v295 = vshrl.u32 %v294, 7
        %v296 = vsub.s32 1, %v295
        %v297 = vrot.slane %v288, %v296
        %v298 = vcombine.low %v293, %v297
        %v300 = vmul.f32 %v185, %v298
        %301 = vst [vmem:[%s184] sm:$0xff] %v300
        %p302 = scmp.lt.s32.totalorder %s15, 1
        %s303 = scalar_select %p302, %s15, 1
        %s304 = smul.addr %s303, 2
        %s305 = smul.addr %s304, 4
        %s306 = scalar_lea.vmem %s3, %s305
        // Predicated region
        $region37: #{coordconv_block.1} parent=31 // pred_check
          %p307 = pneg %p101
        $region38: #{coordconv_block.1} parent=31 // pred_check_branch
          %309 = sbr.rel (%p307) target = $region40
        $region39: #{coordconv_block.1} parent=31 // pred_region
          _
        $region40: #{coordconv_block.1} parent=31 // pred_fallthru
          _
      $region32: #{coordconv_block.1} parent=5 // pred_fallthru
        _
      %p310 = scmp.le.s32.totalorder 2, %s10
      // Predicated region
      $region41: #{coordconv_block.1} parent=5 // pred_check
        %p311 = pneg %p310
      $region42: #{coordconv_block.1} parent=5 // pred_check_branch
        %313 = sbr.rel (%p311) target = $region44
      $region43: #{coordconv_block.1} parent=5 // pred_region
        %s314 = ssub.s32 %s10, 2
        // Predicated region
        $region45: #{coordconv_block.1} parent=43 // pred_check
          %p315 = pneg %p107
        $region46: #{coordconv_block.1} parent=43 // pred_check_branch
          %317 = sbr.rel (%p315) target = $region48
        $region47: #{coordconv_block.1} parent=43 // pred_region
          %p318 = scmp.lt.s32.totalorder %s16, 1
          %s319 = scalar_select %p318, %s16, 1
          %s320 = smul.addr %s319, 2
          %s321 = smul.addr %s320, 4
          %s322 = scalar_lea.vmem %s3, %s321
        $region48: #{coordconv_block.1} parent=43 // pred_fallthru
          _
      $region44: #{coordconv_block.1} parent=5 // pred_fallthru
        _
    $region6: #{coordconv_block.1} parent=1 // loop_footer
      %s14 = sadd.s32 1, %s10
    $region7: #{coordconv_block.1} parent=1 // loop_footer_branch
      %9 = sbr.rel target = $region3
    $region8: #{coordconv_block.1} parent=1 // loop_exit
      _
    %323 = vsyncpa [#allocation3], 1
    %s324 = scalar_lea.sflag [#allocation3], 1
    %325 = vsyncpa %s324, 1

</llo_original>
